<compile_context>
chip_gen: v7x
topology: tpu7x:2x2x1
jax: 0.10.0
libtpu: 0.0.40
codegen_flags: <defaults>
</compile_context>

<pallas_src>
import jax
import jax.numpy as jnp
from jax.experimental import pallas as pl
from jax.experimental.pallas import tpu as pltpu

IN_DIM = 21 * 4   # 84
H1 = 16
LATENT = 8
H2 = 12
OUT_DIM = 13 * 4  # 52


def _round_up(n, m):
    return ((n + m - 1) // m) * m


def _pick_tile_and_vmem():
    """Per-generation default batch tile and scoped-VMEM limit."""
    try:
        vmem_phys = pltpu.get_tpu_info().vmem_capacity_bytes
    except Exception:
        vmem_phys = None
    if vmem_phys is not None and vmem_phys >= (100 << 20):
        # v5e / v6e: 128 MiB physical VMEM -> big tiles, raise scoped limit.
        return 16384, 48 << 20
    # v7x (64 MiB physical per TC) or unknown: conservative but still large.
    return 8192, 28 << 20


def ae_kernel(x_ref, w1_ref, b1_ref, w23_ref, b23_ref, w4_ref, b4_ref, out_ref):
    x = x_ref[...]                                            # (TB, 84)

    # encoder: Linear(84,16) + ReLU
    h = jnp.dot(x, w1_ref[...], preferred_element_type=jnp.float32) + b1_ref[...]
    h = jnp.maximum(h, 0.0)

    # fused Linear(16,8) -> Linear(8,12) (no activation in between) + ReLU
    d = jnp.dot(h, w23_ref[...], preferred_element_type=jnp.float32) + b23_ref[...]
    d = jnp.maximum(d, 0.0)

    # decoder: Linear(12,52) + Tanh
    y = jnp.dot(d, w4_ref[...], preferred_element_type=jnp.float32) + b4_ref[...]
    out_ref[...] = jnp.tanh(y)


def ae_forward(x, params, tb=None):
    B = x.shape[0]
    w1, b1, w2, b2, w3, b3, w4, b4 = params

    # Algebraic fusion of the two activation-free linear layers (exact in f32
    # up to rounding). Tiny matrices -> negligible wrapper cost.
    w23 = w2 @ w3                       # (16, 12)
    b23 = b2 @ w3 + b3                  # (1, 12)

    default_tb, vmem_limit = _pick_tile_and_vmem()
    if tb is None:
        tb = default_tb

    # Batch tile: multiple of 8 (sublane rule), no larger than the 8-padded
    # batch.  No host-side jnp.pad / slice: Pallas masks the ragged last block.
    bp8 = _round_up(max(B, 1), 8)
    tb = min(max(8, _round_up(tb, 8)), bp8)
    n_tiles = pl.cdiv(B, tb)

    # If a large batch collapsed into a single tile, split it so both
    # TensorCores on v7x get work (extra grid step is negligible elsewhere).
    if n_tiles == 1 and bp8 >= 4096:
        tb = _round_up(pl.cdiv(bp8, 2), 8)
        n_tiles = pl.cdiv(B, tb)

    def const_spec(shape):
        # Weights/biases: same block every grid step -> stays resident in VMEM.
        return pl.BlockSpec(shape, lambda i: (0, 0))

    flops_per_row = 2 * (IN_DIM * H1 + H1 * H2 + H2 * OUT_DIM)
    weight_bytes = 4 * (IN_DIM * H1 + H1 + H1 * H2 + H2 + H2 * OUT_DIM + OUT_DIM)
    cost = pl.CostEstimate(
        flops=B * flops_per_row,
        transcendentals=B * OUT_DIM,                      # tanh
        bytes_accessed=B * 4 * (IN_DIM + OUT_DIM) + weight_bytes,
    )

    out = pl.pallas_call(
        ae_kernel,
        out_shape=jax.ShapeDtypeStruct((B, OUT_DIM), jnp.float32),
        grid_spec=pl.GridSpec(
            grid=(n_tiles,),
            in_specs=[
                pl.BlockSpec((tb, IN_DIM), lambda i: (i, 0)),   # x: streamed
                const_spec((IN_DIM, H1)), const_spec((1, H1)),
                const_spec((H1, H2)), const_spec((1, H2)),      # fused W23/b23
                const_spec((H2, OUT_DIM)), const_spec((1, OUT_DIM)),
            ],
            out_specs=pl.BlockSpec((tb, OUT_DIM), lambda i: (i, 0)),
        ),
        compiler_params=pltpu.CompilerParams(
            dimension_semantics=("parallel",),
            vmem_limit_bytes=vmem_limit,
        ),
        cost_estimate=cost,
    )(x, w1, b1, w23, b23, w4, b4)

    return out


def init_params(key):
    """Deterministic init matching PyTorch nn.Linear default:
    U(-1/sqrt(fan_in), 1/sqrt(fan_in)) for both weight and bias."""
    dims = [(IN_DIM, H1), (H1, LATENT), (LATENT, H2), (H2, OUT_DIM)]
    params = []
    keys = jax.random.split(key, 2 * len(dims))
    for idx, (fan_in, fan_out) in enumerate(dims):
        bound = 1.0 / jnp.sqrt(jnp.float32(fan_in))
        w = jax.random.uniform(keys[2 * idx], (fan_in, fan_out),
                               minval=-bound, maxval=bound, dtype=jnp.float32)
        b = jax.random.uniform(keys[2 * idx + 1], (1, fan_out),
                               minval=-bound, maxval=bound, dtype=jnp.float32)
        params.extend([w, b])
    return tuple(params)


def ae_reference(x, params):
    """Pure-JAX reference of the (unfused) forward pass."""
    w1, b1, w2, b2, w3, b3, w4, b4 = params
    h = jnp.maximum(x @ w1 + b1, 0.0)
    z = h @ w2 + b2
    d = jnp.maximum(z @ w3 + b3, 0.0)
    return jnp.tanh(d @ w4 + b4)


if __name__ == "__main__":
    key = jax.random.PRNGKey(0)
    k_x, k_x2, k_p = jax.random.split(key, 3)
    params = init_params(k_p)

    # Small aligned batch (single tile).
    B = 8
    x = jax.random.normal(k_x, (B, IN_DIM), dtype=jnp.float32)
    out = jax.block_until_ready(ae_forward(x, params))
    ref = ae_reference(x, params)
    assert out.shape == (B, OUT_DIM)
    assert jnp.allclose(out, ref, atol=1e-5, rtol=1e-5)

    # Ragged, multi-tile batch (exercises the no-pad masked last block).
    B2 = 100
    x2 = jax.random.normal(k_x2, (B2, IN_DIM), dtype=jnp.float32)
    out2 = jax.block_until_ready(ae_forward(x2, params, tb=32))
    ref2 = ae_reference(x2, params)
    assert out2.shape == (B2, OUT_DIM)
    assert jnp.allclose(out2, ref2, atol=1e-5, rtol=1e-5)

    print("KERNEL_OK")
</pallas_src>

<mosaic_0001>
module attributes {stable_mosaic.version = 11 : i64} {
  func.func @ae_kernel(%arg0: i32, %arg1: memref<8x84xf32, #tpu.memory_space<vmem>>, %arg2: memref<84x16xf32, #tpu.memory_space<vmem>>, %arg3: memref<1x16xf32, #tpu.memory_space<vmem>>, %arg4: memref<16x12xf32, #tpu.memory_space<vmem>>, %arg5: memref<1x12xf32, #tpu.memory_space<vmem>>, %arg6: memref<12x52xf32, #tpu.memory_space<vmem>>, %arg7: memref<1x52xf32, #tpu.memory_space<vmem>>, %arg8: memref<8x52xf32, #tpu.memory_space<vmem>>) attributes {dimension_semantics = [#tpu.dimension_semantics<parallel>], iteration_bounds = array<i64: 1>, scalar_prefetch = 0 : i64, scratch_operands = 0 : i64, tpu.core_type = #tpu.core_type<tc>, window_params = [{transform_indices = @transform_0, window_bounds = array<i64: 8, 84>}, {pipeline_mode = #tpu.pipeline_mode<synchronous>, transform_indices = @transform_1, window_bounds = array<i64: 84, 16>}, {pipeline_mode = #tpu.pipeline_mode<synchronous>, transform_indices = @transform_2, window_bounds = array<i64: 1, 16>}, {pipeline_mode = #tpu.pipeline_mode<synchronous>, transform_indices = @transform_3, window_bounds = array<i64: 16, 12>}, {pipeline_mode = #tpu.pipeline_mode<synchronous>, transform_indices = @transform_4, window_bounds = array<i64: 1, 12>}, {pipeline_mode = #tpu.pipeline_mode<synchronous>, transform_indices = @transform_5, window_bounds = array<i64: 12, 52>}, {pipeline_mode = #tpu.pipeline_mode<synchronous>, transform_indices = @transform_6, window_bounds = array<i64: 1, 52>}, {transform_indices = @transform_7, window_bounds = array<i64: 8, 52>}]} {
    %c0 = arith.constant 0 : index
    %c0_0 = arith.constant 0 : index
    %0 = vector.load %arg1[%c0, %c0_0] : memref<8x84xf32, #tpu.memory_space<vmem>>, vector<8x84xf32>
    %c0_1 = arith.constant 0 : index
    %c0_2 = arith.constant 0 : index
    %1 = vector.load %arg2[%c0_1, %c0_2] : memref<84x16xf32, #tpu.memory_space<vmem>>, vector<84x16xf32>
    %cst = arith.constant dense<0.000000e+00> : vector<8x16xf32>
    %2 = tpu.matmul %0, %1, %cst {dimension_numbers = #tpu.dot_dimension_numbers<[1], [0], [0], [1], [0, 0, 1, 1], [], []>} : vector<8x84xf32>, vector<84x16xf32>, vector<8x16xf32> -> vector<8x16xf32>
    %c0_3 = arith.constant 0 : index
    %c0_4 = arith.constant 0 : index
    %3 = vector.load %arg3[%c0_3, %c0_4] : memref<1x16xf32, #tpu.memory_space<vmem>>, vector<1x16xf32>
    %4 = vector.broadcast %3 : vector<1x16xf32> to vector<8x16xf32>
    %5 = arith.addf %2, %4 : vector<8x16xf32>
    %cst_5 = arith.constant 0.000000e+00 : f32
    %6 = vector.broadcast %cst_5 : f32 to vector<8x16xf32>
    %7 = arith.maximumf %5, %6 : vector<8x16xf32>
    %c0_6 = arith.constant 0 : index
    %c0_7 = arith.constant 0 : index
    %8 = vector.load %arg4[%c0_6, %c0_7] : memref<16x12xf32, #tpu.memory_space<vmem>>, vector<16x12xf32>
    %cst_8 = arith.constant dense<0.000000e+00> : vector<8x12xf32>
    %9 = tpu.matmul %7, %8, %cst_8 {dimension_numbers = #tpu.dot_dimension_numbers<[1], [0], [0], [1], [0, 0, 1, 1], [], []>} : vector<8x16xf32>, vector<16x12xf32>, vector<8x12xf32> -> vector<8x12xf32>
    %c0_9 = arith.constant 0 : index
    %c0_10 = arith.constant 0 : index
    %10 = vector.load %arg5[%c0_9, %c0_10] : memref<1x12xf32, #tpu.memory_space<vmem>>, vector<1x12xf32>
    %11 = vector.broadcast %10 : vector<1x12xf32> to vector<8x12xf32>
    %12 = arith.addf %9, %11 : vector<8x12xf32>
    %cst_11 = arith.constant 0.000000e+00 : f32
    %13 = vector.broadcast %cst_11 : f32 to vector<8x12xf32>
    %14 = arith.maximumf %12, %13 : vector<8x12xf32>
    %c0_12 = arith.constant 0 : index
    %c0_13 = arith.constant 0 : index
    %15 = vector.load %arg6[%c0_12, %c0_13] : memref<12x52xf32, #tpu.memory_space<vmem>>, vector<12x52xf32>
    %cst_14 = arith.constant dense<0.000000e+00> : vector<8x52xf32>
    %16 = tpu.matmul %14, %15, %cst_14 {dimension_numbers = #tpu.dot_dimension_numbers<[1], [0], [0], [1], [0, 0, 1, 1], [], []>} : vector<8x12xf32>, vector<12x52xf32>, vector<8x52xf32> -> vector<8x52xf32>
    %c0_15 = arith.constant 0 : index
    %c0_16 = arith.constant 0 : index
    %17 = vector.load %arg7[%c0_15, %c0_16] : memref<1x52xf32, #tpu.memory_space<vmem>>, vector<1x52xf32>
    %18 = vector.broadcast %17 : vector<1x52xf32> to vector<8x52xf32>
    %19 = arith.addf %16, %18 : vector<8x52xf32>
    %20 = math.tanh %19 : vector<8x52xf32>
    %c0_17 = arith.constant 0 : index
    %c0_18 = arith.constant 0 : index
    %21 = vector.load %arg8[%c0_17, %c0_18] : memref<8x52xf32, #tpu.memory_space<vmem>>, vector<8x52xf32>
    tpu.vector_store %arg8[%c0_17, %c0_18], %20 {strides = array<i32>} : memref<8x52xf32, #tpu.memory_space<vmem>>, vector<8x52xf32>,
    return
  }
  func.func @transform_0(%arg0: i32) -> (i32, i32) {
    %c0_i32 = arith.constant 0 : i32
    %c0_i32_0 = arith.constant 0 : i32
    return %arg0, %c0_i32 : i32, i32
  }
  func.func @transform_1(%arg0: i32) -> (i32, i32) {
    %c0_i32 = arith.constant 0 : i32
    %c0_i32_0 = arith.constant 0 : i32
    %c0_i32_1 = arith.constant 0 : i32
    return %c0_i32, %c0_i32_0 : i32, i32
  }
  func.func @transform_2(%arg0: i32) -> (i32, i32) {
    %c0_i32 = arith.constant 0 : i32
    %c0_i32_0 = arith.constant 0 : i32
    %c0_i32_1 = arith.constant 0 : i32
    return %c0_i32, %c0_i32_0 : i32, i32
  }
  func.func @transform_3(%arg0: i32) -> (i32, i32) {
    %c0_i32 = arith.constant 0 : i32
    %c0_i32_0 = arith.constant 0 : i32
    %c0_i32_1 = arith.constant 0 : i32
    return %c0_i32, %c0_i32_0 : i32, i32
  }
  func.func @transform_4(%arg0: i32) -> (i32, i32) {
    %c0_i32 = arith.constant 0 : i32
    %c0_i32_0 = arith.constant 0 : i32
    %c0_i32_1 = arith.constant 0 : i32
    return %c0_i32, %c0_i32_0 : i32, i32
  }
  func.func @transform_5(%arg0: i32) -> (i32, i32) {
    %c0_i32 = arith.constant 0 : i32
    %c0_i32_0 = arith.constant 0 : i32
    %c0_i32_1 = arith.constant 0 : i32
    return %c0_i32, %c0_i32_0 : i32, i32
  }
  func.func @transform_6(%arg0: i32) -> (i32, i32) {
    %c0_i32 = arith.constant 0 : i32
    %c0_i32_0 = arith.constant 0 : i32
    %c0_i32_1 = arith.constant 0 : i32
    return %c0_i32, %c0_i32_0 : i32, i32
  }
  func.func @transform_7(%arg0: i32) -> (i32, i32) {
    %c0_i32 = arith.constant 0 : i32
    %c0_i32_0 = arith.constant 0 : i32
    return %arg0, %c0_i32 : i32, i32
  }
}

</mosaic_0001>

<llo_original>
// kernel: tpu_custom_call.1
$region0: #{tpu_custom_call.1}
  #allocation0 [shape = 'u32[]', space=smem, size = 0x4, offset = 0x4, fixed_abs, tag = 'smem constant byte address 0x4 - core index']
  #allocation1 [shape = 'u32[144,128]{1,0:T(1,128)}', space=vmem, size = 0x12000, scoped, tag = 'internal scratch']
  %s0 = inlined_call_operand.vmem [shape: f32[8,84], index: 0, kind: input, shape index: {}]
  %s1 = inlined_call_operand.vmem [shape: f32[84,16], index: 1, kind: input, shape index: {}]
  %s2 = inlined_call_operand.vmem [shape: f32[1,16], index: 2, kind: input, shape index: {}]
  %s3 = inlined_call_operand.vmem [shape: f32[16,12], index: 3, kind: input, shape index: {}]
  %s4 = inlined_call_operand.vmem [shape: f32[1,12], index: 4, kind: input, shape index: {}]
  %s5 = inlined_call_operand.vmem [shape: f32[12,52], index: 5, kind: input, shape index: {}]
  %s6 = inlined_call_operand.vmem [shape: f32[1,52], index: 6, kind: input, shape index: {}]
  %s7 = inlined_call_operand.hbm [shape: f32[8,52], index: 7, kind: output, shape index: {}]
  %s8 = sld [smem:[#allocation0]]
  $region38: #{tpu_custom_call.1} parent=0
    _
  %s10 = ssub.s32 1, %s8
  %s11 = scalar_select 0, %s10, %s8
  $region1: #{tpu_custom_call.1} parent=0
    #allocation2 [shape = 'u8[4096]{0}', space=vmem, size = 0x1000, scoped, tag = 'output window, operand 0, single buffered']
    #allocation3 [shape = 's32[1]{0}', space=sflag, size = 0x4, scoped, tag = 'scoped memory for tpu_custom_call.1']
    %12 = vsyncpa [#allocation3], 0
    // Predicated region
    $region2: #{tpu_custom_call.1} parent=1 // pred_check
      _
    $region3: #{tpu_custom_call.1} parent=1 // pred_check_branch
      %14 = sbr.rel (0) target = $region5
    $region4: #{tpu_custom_call.1} parent=1 // pred_region
      _
    $region5: #{tpu_custom_call.1} parent=1 // pred_fallthru
      _
    // Predicated region
    $region6: #{tpu_custom_call.1} parent=1 // pred_check
      _
    $region7: #{tpu_custom_call.1} parent=1 // pred_check_branch
      %16 = sbr.rel (0) target = $region9
    $region8: #{tpu_custom_call.1} parent=1 // pred_region
      _
    $region9: #{tpu_custom_call.1} parent=1 // pred_fallthru
      _
    // Predicated region
    $region10: #{tpu_custom_call.1} parent=1 // pred_check
      _
    $region11: #{tpu_custom_call.1} parent=1 // pred_check_branch
      %18 = sbr.rel (0) target = $region13
    $region12: #{tpu_custom_call.1} parent=1 // pred_region
      _
    $region13: #{tpu_custom_call.1} parent=1 // pred_fallthru
      _
    // Predicated region
    $region14: #{tpu_custom_call.1} parent=1 // pred_check
      _
    $region15: #{tpu_custom_call.1} parent=1 // pred_check_branch
      %20 = sbr.rel (0) target = $region17
    $region16: #{tpu_custom_call.1} parent=1 // pred_region
      _
    $region17: #{tpu_custom_call.1} parent=1 // pred_fallthru
      _
    // Predicated region
    $region18: #{tpu_custom_call.1} parent=1 // pred_check
      _
    $region19: #{tpu_custom_call.1} parent=1 // pred_check_branch
      %22 = sbr.rel (0) target = $region21
    $region20: #{tpu_custom_call.1} parent=1 // pred_region
      _
    $region21: #{tpu_custom_call.1} parent=1 // pred_fallthru
      _
    // Predicated region
    $region22: #{tpu_custom_call.1} parent=1 // pred_check
      _
    $region23: #{tpu_custom_call.1} parent=1 // pred_check_branch
      %24 = sbr.rel (0) target = $region25
    $region24: #{tpu_custom_call.1} parent=1 // pred_region
      _
    $region25: #{tpu_custom_call.1} parent=1 // pred_fallthru
      _
    // Predicated region
    $region26: #{tpu_custom_call.1} parent=1 // pred_check
      _
    $region27: #{tpu_custom_call.1} parent=1 // pred_check_branch
      %26 = sbr.rel (0) target = $region29
    $region28: #{tpu_custom_call.1} parent=1 // pred_region
      _
    $region29: #{tpu_custom_call.1} parent=1 // pred_fallthru
      _
    %v27 = vld [vmem:[%s0] sm:$0xff]
    %v28 = vld [vmem:[%s1] sm:$0xff]
    %v29 = vld [vmem:[%s1 + $0x8] sm:$0xff]
    %v30 = vld [vmem:[%s1 + $0x10] sm:$0xff]
    %v31 = vld [vmem:[%s1 + $0x18] sm:$0xff]
    %v32 = vld [vmem:[%s1 + $0x20] sm:$0xff]
    %v33 = vld [vmem:[%s1 + $0x28] sm:$0xff]
    %v34 = vld [vmem:[%s1 + $0x30] sm:$0xff]
    %v35 = vld [vmem:[%s1 + $0x38] sm:$0xff]
    %v36 = vld [vmem:[%s1 + $0x40] sm:$0xff]
    %v37 = vld [vmem:[%s1 + $0x48] sm:$0xff]
    %v38 = vld [vmem:[%s1 + $0x50] sm:$0xf]
    %v39 = vld [vmem:[%s2] sm:$0x1]
    %v41 = vlaneseq
    %v42 = vshrl.u32 %v41, 7
    %v43 = vsub.s32 0, %v42
    %v44 = vrot.slane %v39, %v43
    %vm46 = vcmask 687104
    %v48 = vsel %vm46, %v27, 0
    %vm50 = vcmask 1043456
    %v52 = vsel %vm50, %v38, 0
    %54 = vmatprep.subr.mxu0 0.0
    %55 = vmatpush1.msra.mxu0 %v28
    %56 = vmatprep.subr.mxu0 0.0
    %57 = vmatpush1.msra.mxu0 %v29
    %58 = vmatprep.subr.mxu0 0.0
    %59 = vmatpush1.msra.mxu0 %v30
    %60 = vmatprep.subr.mxu0 0.0
    %61 = vmatpush1.msra.mxu0 %v31
    %62 = vmatprep.subr.mxu0 0.0
    %63 = vmatpush1.msra.mxu0 %v32
    %64 = vmatprep.subr.mxu0 0.0
    %65 = vmatpush1.msra.mxu0 %v33
    %66 = vmatprep.subr.mxu0 0.0
    %67 = vmatpush1.msra.mxu0 %v34
    %68 = vmatprep.subr.mxu0 0.0
    %69 = vmatpush1.msra.mxu0 %v35
    %70 = vmatprep.subr.mxu0 0.0
    %71 = vmatpush1.msra.mxu0 %v36
    %72 = vmatprep.subr.mxu0 0.0
    %73 = vmatpush1.msra.mxu0 %v37
    %74 = vmatprep.subr.mxu0 0.0
    %75 = vmatpush1.msra.mxu0 %v52
    %76 = vmatprep.subr.mxu0 0.0
    %77 = vmatpush1.msra.mxu0 0.0
    %78 = vmatprep.subr.mxu0 0.0
    %79 = vmatpush1.msra.mxu0 0.0
    %80 = vmatprep.subr.mxu0 0.0
    %81 = vmatpush1.msra.mxu0 0.0
    %82 = vmatprep.subr.mxu0 0.0
    %83 = vmatpush1.msra.mxu0 0.0
    %84 = vmatprep.subr.mxu0 0.0
    %85 = vmatpush1.msra.mxu0 0.0
    %86 = vmatprep.subr.mxu0 0.0
    %87 = vmatpush1.msra.mxu0 0.0
    %88 = vmatprep.subr.mxu0 0.0
    %89 = vmatpush1.msra.mxu0 0.0
    %90 = vmatprep.subr.mxu0 0.0
    %91 = vmatpush1.msra.mxu0 0.0
    %92 = vmatprep.subr.mxu0 0.0
    %93 = vmatpush1.msra.mxu0 0.0
    %94 = vmatprep.subr.mxu0 0.0
    %95 = vmatpush1.msra.mxu0 0.0
    %96 = vmatprep.subr.mxu0 0.0
    %97 = vmatpush1.msra.mxu0 0.0
    %98 = vmatprep.subr.mxu0 0.0
    %99 = vmatpush1.msra.mxu0 0.0
    %100 = vmatprep.subr.mxu0 0.0
    %101 = vmatpush1.msra.mxu0 0.0
    %102 = vmatprep.subr.mxu0 0.0
    %103 = vmatpush1.msra.mxu0 0.0
    %104 = vmatprep.subr.mxu0 0.0
    %105 = vmatpush1.msra.mxu0 0.0
    %106 = vmatprep.subr.mxu0 0.0
    %107 = vmatpush1.msra.mxu0 0.0
    %108 = vmatprep.subr.mxu0 0.0
    %109 = vmatpush1.msra.mxu0 0.0
    %110 = vmatprep.subr.mxu0 0.0
    %111 = vmatpush1.msra.mxu0 0.0
    %112 = vmatprep.subr.mxu0 0.0
    %113 = vmatpush1.msra.mxu0 0.0
    %114 = vmatprep.subr.mxu0 0.0
    %115 = vmatpush1.msra.mxu0 0.0
    %116 = vmatprep.subr.mxu0 0.0
    %117 = vmatpush1.msra.mxu0 0.0
    %118 = vmatprep.mubr.f32.mxu0 0.0
    %119 = vmatmul.mubr.f32.gmra.mrb[0].mxu0 %v48
    %v120 = vpop.f32.mrb[0].mxu0
    %v121 = vadd.f32 %v44, %v120
    %v122 = vpop.f32.mrb[0].mxu0
    %123 = vdwg.mxu0
    %v124 = vmax.f32 %v121, 0.0
    %v125 = vld [vmem:[%s3] sm:$0xff]
    %v126 = vld [vmem:[%s3 + $0x8] sm:$0xff]
    %v127 = vld [vmem:[%s4] sm:$0x1]
    %v129 = vlaneseq
    %v130 = vshrl.u32 %v129, 7
    %v131 = vsub.s32 0, %v130
    %v132 = vrot.slane %v127, %v131
    %vm134 = vcmask 130048
    %v136 = vsel %vm134, %v124, 0
    %138 = vmatprep.subr.mxu0 0.0
    %139 = vmatpush1.msra.mxu0 %v125
    %140 = vmatprep.subr.mxu0 0.0
    %141 = vmatpush1.msra.mxu0 %v126
    %142 = vmatprep.subr.mxu0 0.0
    %143 = vmatpush1.msra.mxu0 0.0
    %144 = vmatprep.subr.mxu0 0.0
    %145 = vmatpush1.msra.mxu0 0.0
    %146 = vmatprep.subr.mxu0 0.0
    %147 = vmatpush1.msra.mxu0 0.0
    %148 = vmatprep.subr.mxu0 0.0
    %149 = vmatpush1.msra.mxu0 0.0
    %150 = vmatprep.subr.mxu0 0.0
    %151 = vmatpush1.msra.mxu0 0.0
    %152 = vmatprep.subr.mxu0 0.0
    %153 = vmatpush1.msra.mxu0 0.0
    %154 = vmatprep.subr.mxu0 0.0
    %155 = vmatpush1.msra.mxu0 0.0
    %156 = vmatprep.subr.mxu0 0.0
    %157 = vmatpush1.msra.mxu0 0.0
    %158 = vmatprep.subr.mxu0 0.0
    %159 = vmatpush1.msra.mxu0 0.0
    %160 = vmatprep.subr.mxu0 0.0
    %161 = vmatpush1.msra.mxu0 0.0
    %162 = vmatprep.subr.mxu0 0.0
    %163 = vmatpush1.msra.mxu0 0.0
    %164 = vmatprep.subr.mxu0 0.0
    %165 = vmatpush1.msra.mxu0 0.0
    %166 = vmatprep.subr.mxu0 0.0
    %167 = vmatpush1.msra.mxu0 0.0
    %168 = vmatprep.subr.mxu0 0.0
    %169 = vmatpush1.msra.mxu0 0.0
    %170 = vmatprep.subr.mxu0 0.0
    %171 = vmatpush1.msra.mxu0 0.0
    %172 = vmatprep.subr.mxu0 0.0
    %173 = vmatpush1.msra.mxu0 0.0
    %174 = vmatprep.subr.mxu0 0.0
    %175 = vmatpush1.msra.mxu0 0.0
    %176 = vmatprep.subr.mxu0 0.0
    %177 = vmatpush1.msra.mxu0 0.0
    %178 = vmatprep.subr.mxu0 0.0
    %179 = vmatpush1.msra.mxu0 0.0
    %180 = vmatprep.subr.mxu0 0.0
    %181 = vmatpush1.msra.mxu0 0.0
    %182 = vmatprep.subr.mxu0 0.0
    %183 = vmatpush1.msra.mxu0 0.0
    %184 = vmatprep.subr.mxu0 0.0
    %185 = vmatpush1.msra.mxu0 0.0
    %186 = vmatprep.subr.mxu0 0.0
    %187 = vmatpush1.msra.mxu0 0.0
    %188 = vmatprep.subr.mxu0 0.0
    %189 = vmatpush1.msra.mxu0 0.0
    %190 = vmatprep.subr.mxu0 0.0
    %191 = vmatpush1.msra.mxu0 0.0
    %192 = vmatprep.subr.mxu0 0.0
    %193 = vmatpush1.msra.mxu0 0.0
    %194 = vmatprep.subr.mxu0 0.0
    %195 = vmatpush1.msra.mxu0 0.0
    %196 = vmatprep.subr.mxu0 0.0
    %197 = vmatpush1.msra.mxu0 0.0
    %198 = vmatprep.subr.mxu0 0.0
    %199 = vmatpush1.msra.mxu0 0.0
    %200 = vmatprep.subr.mxu0 0.0
    %201 = vmatpush1.msra.mxu0 0.0
    %202 = vmatprep.mubr.f32.mxu0 0.0
    %203 = vmatmul.mubr.f32.gmra.mrb[0].mxu0 %v136
    %v204 = vpop.f32.mrb[0].mxu0
    %v205 = vadd.f32 %v132, %v204
    %v206 = vpop.f32.mrb[0].mxu0
    %207 = vdwg.mxu0
    %v208 = vmax.f32 %v205, 0.0
    %v209 = vld [vmem:[%s5] sm:$0xff]
    %v210 = vld [vmem:[%s5 + $0x8] sm:$0xf]
    %v211 = vld [vmem:[%s6] sm:$0x1]
    %v213 = vlaneseq
    %v214 = vshrl.u32 %v213, 7
    %v215 = vsub.s32 0, %v214
    %v216 = vrot.slane %v211, %v215
    %vm218 = vcmask 97280
    %v220 = vsel %vm218, %v208, 0
    %v223 = vsel %vm50, %v210, 0
    %225 = vmatprep.subr.mxu0 0.0
    %226 = vmatpush1.msra.mxu0 %v209
    %227 = vmatprep.subr.mxu0 0.0
    %228 = vmatpush1.msra.mxu0 %v223
    %229 = vmatprep.subr.mxu0 0.0
    %230 = vmatpush1.msra.mxu0 0.0
    %231 = vmatprep.subr.mxu0 0.0
    %232 = vmatpush1.msra.mxu0 0.0
    %233 = vmatprep.subr.mxu0 0.0
    %234 = vmatpush1.msra.mxu0 0.0
    %235 = vmatprep.subr.mxu0 0.0
    %236 = vmatpush1.msra.mxu0 0.0
    %237 = vmatprep.subr.mxu0 0.0
    %238 = vmatpush1.msra.mxu0 0.0
    %239 = vmatprep.subr.mxu0 0.0
    %240 = vmatpush1.msra.mxu0 0.0
    %241 = vmatprep.subr.mxu0 0.0
    %242 = vmatpush1.msra.mxu0 0.0
    %243 = vmatprep.subr.mxu0 0.0
    %244 = vmatpush1.msra.mxu0 0.0
    %245 = vmatprep.subr.mxu0 0.0
    %246 = vmatpush1.msra.mxu0 0.0
    %247 = vmatprep.subr.mxu0 0.0
    %248 = vmatpush1.msra.mxu0 0.0
    %249 = vmatprep.subr.mxu0 0.0
    %250 = vmatpush1.msra.mxu0 0.0
    %251 = vmatprep.subr.mxu0 0.0
    %252 = vmatpush1.msra.mxu0 0.0
    %253 = vmatprep.subr.mxu0 0.0
    %254 = vmatpush1.msra.mxu0 0.0
    %255 = vmatprep.subr.mxu0 0.0
    %256 = vmatpush1.msra.mxu0 0.0
    %257 = vmatprep.subr.mxu0 0.0
    %258 = vmatpush1.msra.mxu0 0.0
    %259 = vmatprep.subr.mxu0 0.0
    %260 = vmatpush1.msra.mxu0 0.0
    %261 = vmatprep.subr.mxu0 0.0
    %262 = vmatpush1.msra.mxu0 0.0
    %263 = vmatprep.subr.mxu0 0.0
    %264 = vmatpush1.msra.mxu0 0.0
    %265 = vmatprep.subr.mxu0 0.0
    %266 = vmatpush1.msra.mxu0 0.0
    %267 = vmatprep.subr.mxu0 0.0
    %268 = vmatpush1.msra.mxu0 0.0
    %269 = vmatprep.subr.mxu0 0.0
    %270 = vmatpush1.msra.mxu0 0.0
    %271 = vmatprep.subr.mxu0 0.0
    %272 = vmatpush1.msra.mxu0 0.0
    %273 = vmatprep.subr.mxu0 0.0
    %274 = vmatpush1.msra.mxu0 0.0
    %275 = vmatprep.subr.mxu0 0.0
    %276 = vmatpush1.msra.mxu0 0.0
    %277 = vmatprep.subr.mxu0 0.0
    %278 = vmatpush1.msra.mxu0 0.0
    %279 = vmatprep.subr.mxu0 0.0
    %280 = vmatpush1.msra.mxu0 0.0
    %281 = vmatprep.subr.mxu0 0.0
    %282 = vmatpush1.msra.mxu0 0.0
    %283 = vmatprep.subr.mxu0 0.0
    %284 = vmatpush1.msra.mxu0 0.0
    %285 = vmatprep.subr.mxu0 0.0
    %286 = vmatpush1.msra.mxu0 0.0
    %287 = vmatprep.subr.mxu0 0.0
    %288 = vmatpush1.msra.mxu0 0.0
    %289 = vmatprep.mubr.f32.mxu0 0.0
    %290 = vmatmul.mubr.f32.gmra.mrb[0].mxu0 %v220
    %v291 = vpop.f32.mrb[0].mxu0
    %v292 = vadd.f32 %v216, %v291
    %v293 = vpop.f32.mrb[0].mxu0
    %294 = vdwg.mxu0
    %v295 = vtanh.pop %v292
    %vm296 = vcmask 424960
    %297 = vst.msk [vmem:[#allocation2] sm:$0xff] %vm296, %v295
    // Predicated region
    $region30: #{tpu_custom_call.1} parent=1 // pred_check
      _
    $region31: #{tpu_custom_call.1} parent=1 // pred_check_branch
      %299 = sbr.rel (0) target = $region33
    $region32: #{tpu_custom_call.1} parent=1 // pred_region
      %s301 = ssub.s32 128, 128
      %302 = vsyncadd [#allocation3], %s301
      %s304 = sshll.u32 [#allocation2], 4
      %s305 = int_to_ptr.vmem [resolvable:$true] %s304
      %307 = dma.vmem_to_hbm [thread:$0]  %s305, 128, %s7, [#allocation3]
    $region33: #{tpu_custom_call.1} parent=1 // pred_fallthru
      _
    // Predicated region
    $region34: #{tpu_custom_call.1} parent=1 // pred_check
      _
    $region35: #{tpu_custom_call.1} parent=1 // pred_check_branch
      %309 = sbr.rel (0) target = $region37
    $region36: #{tpu_custom_call.1} parent=1 // pred_region
      %310 = dma.done [#allocation3], 128
    $region37: #{tpu_custom_call.1} parent=1 // pred_fallthru
      _
    %311 = vsyncpa [#allocation3], 1

</llo_original>
